<compile_context>
chip_gen: v7x
topology: tpu7x:2x2x1
jax: 0.10.0
libtpu: 0.0.40
codegen_flags: <defaults>
</compile_context>

<pallas_src>
import functools

import jax
import jax.numpy as jnp
from jax.experimental import pallas as pl
from jax.experimental.pallas import tpu as pltpu


# ----------------------------- Pallas kernel -------------------------------- #

def _srel_fused_kernel(phi0_ref, ws_ref, base_ref, phi_out_ref, phi_scr,
                       *, modulus, Ls):
    """One grid step == one SREL update step (recurrence carried in phi_scr)."""
    step = pl.program_id(0)

    @pl.when(step == 0)
    def _():
        phi_scr[...] = phi0_ref[...]              # initialize carried phi

    phi = phi_scr[...]                            # (B, Ls)
    s_r = modulus * jnp.cos(phi)                  # s = modulus * exp(1j*phi)
    s_i = modulus * jnp.sin(phi)

    ws = ws_ref[0]                                # (2*Ls, Ls+2) fused heads, s-rows
    # phi-dependent part of x @ [We|Wr|Wm] for all three heads at once: (B, Ls+2)
    s_part = (jnp.dot(s_r, ws[:Ls], preferred_element_type=jnp.float32)
              + jnp.dot(s_i, ws[Ls:], preferred_element_type=jnp.float32))

    # base already holds w-part + y-part + bias for this step: (B, M, Ls+2)
    z = base_ref[0] + s_part[:, None, :]

    eta = z[..., :Ls]                             # (B, M, Ls)
    rho = z[..., Ls:Ls + 1]                       # (B, M, 1)
    mu = z[..., Ls + 1:Ls + 2]                    # (B, M, 1)

    eta_net = jnp.sum(mu * rho * eta, axis=1)     # reduce over M -> (B, Ls)
    phi_new = phi - eta_net

    phi_scr[...] = phi_new                        # carry to next step
    phi_out_ref[0] = phi_new                      # emit phi_{step+1}


def srel_fused(phi0, ws_stack, base_stack, *, modulus):
    """Run all N_step update steps in one pallas_call.

    phi0       : (B, Ls)                float32
    ws_stack   : (N_step, 2*Ls, Ls+2)   float32  (phi-dependent weight rows)
    base_stack : (N_step, B, M, Ls+2)   float32  (precomputed w/y/bias part)
    returns    : (N_step, B, Ls)        phi after each update step
    """
    B, Ls = phi0.shape
    N_step = ws_stack.shape[0]
    M = base_stack.shape[2]
    C = Ls + 2

    kernel = functools.partial(_srel_fused_kernel, modulus=modulus, Ls=Ls)
    return pl.pallas_call(
        kernel,
        grid=(N_step,),
        in_specs=[
            pl.BlockSpec((B, Ls), lambda k: (0, 0)),            # phi0 (read once)
            pl.BlockSpec((1, 2 * Ls, C), lambda k: (k, 0, 0)),   # per-step s-weights
            pl.BlockSpec((1, B, M, C), lambda k: (k, 0, 0, 0)),  # per-step base
        ],
        out_specs=pl.BlockSpec((1, B, Ls), lambda k: (k, 0, 0)),
        out_shape=jax.ShapeDtypeStruct((N_step, B, Ls), jnp.float32),
        scratch_shapes=[pltpu.VMEM((B, Ls), jnp.float32)],       # carried phi
        compiler_params=pltpu.CompilerParams(
            dimension_semantics=("arbitrary",)),                 # true recurrence
    )(phi0, ws_stack, base_stack)


# ----------------------------- parameter setup ------------------------------ #

def make_step_params(key, Ls, Lw, Ly):
    D = 2 * Ls + 2 * Lw + Ly
    ks = jax.random.split(key, 6)
    bound = 1.0 / float(D) ** 0.5

    def u(k, shape):
        return jax.random.uniform(k, shape, jnp.float32, -bound, bound)

    We, be = u(ks[0], (D, Ls)), u(ks[1], (1, Ls))   # Estimate_eta  (D -> Ls)
    Wr, br = u(ks[2], (D, 1)), u(ks[3], (1, 1))     # Estimate_rho  (D -> 1)
    Wm, bm = u(ks[4], (D, 1)), u(ks[5], (1, 1))     # Estimate_mu   (D -> 1)
    return (We, be, Wr, br, Wm, bm)


# ----------------------------- full forward --------------------------------- #

def srel_vary_mu_forward(phi0_batch, w_M_batch, y_M, full_params, *, modulus):
    B, Ls = phi0_batch.shape
    Lw, M = w_M_batch.shape[1], w_M_batch.shape[2]
    N_step = len(full_params)
    C = Ls + 2

    # Fuse the three heads column-wise: W = [We | Wr | Wm] -> (D, Ls+2).
    W_stack = jnp.stack([jnp.concatenate([We, Wr, Wm], axis=1)
                         for (We, be, Wr, br, Wm, bm) in full_params], axis=0)
    b_stack = jnp.stack([jnp.concatenate([be, br, bm], axis=1)
                         for (We, be, Wr, br, Wm, bm) in full_params], axis=0)

    Ws_stack = W_stack[:, :2 * Ls]                    # (K, 2Ls, C)  phi-dependent rows
    Ww_stack = W_stack[:, 2 * Ls:2 * Ls + 2 * Lw]     # (K, 2Lw, C)
    Wy_stack = W_stack[:, 2 * Ls + 2 * Lw:]           # (K, Ly,  C)

    w_r = jnp.transpose(jnp.real(w_M_batch), (0, 2, 1)).astype(jnp.float32)  # (B, M, Lw)
    w_i = jnp.transpose(jnp.imag(w_M_batch), (0, 2, 1)).astype(jnp.float32)
    w_cat = jnp.concatenate([w_r, w_i], axis=-1)                             # (B, M, 2Lw)
    y_t = jnp.transpose(y_M).astype(jnp.float32)                             # (M, Ly)

    # phi-independent contributions for all steps, computed as large XLA matmuls.
    base_w = jnp.einsum('bml,klo->kbmo', w_cat, Ww_stack)        # (K, B, M, C)
    base_y = jnp.einsum('ml,klo->kmo', y_t, Wy_stack)            # (K, M, C)
    base = base_w + base_y[:, None, :, :] + b_stack[:, None, :, :]

    phi0 = phi0_batch.astype(jnp.float32)
    phi_out = srel_fused(phi0, Ws_stack, base, modulus=modulus)  # (K, B, Ls)

    # s_stack[:, k] = modulus * exp(1j * phi_k), k = 0..N_step  (phi_0 = phi0)
    all_phi = jnp.concatenate(
        [phi0[:, None, :], jnp.transpose(phi_out, (1, 0, 2))], axis=1)  # (B, K+1, Ls)
    s_stack = (modulus * jnp.exp(1j * all_phi)).astype(jnp.complex64)
    mu_stack = jnp.zeros((B, N_step, M), jnp.float32)   # never written in reference

    return {'s_stack_batch': s_stack, 'mu_stack_batch': mu_stack}


# ----------------------------- pure-JAX reference --------------------------- #

def reference_forward(phi0_batch, w_M_batch, y_M, full_params, *, modulus):
    B, Ls = phi0_batch.shape
    Lw, M = w_M_batch.shape[1], w_M_batch.shape[2]
    Ly = y_M.shape[0]
    N_step = len(full_params)

    w_r = jnp.transpose(jnp.real(w_M_batch), (0, 2, 1))
    w_i = jnp.transpose(jnp.imag(w_M_batch), (0, 2, 1))
    y_t = jnp.transpose(y_M)

    phi = phi0_batch.astype(jnp.float32)
    s_steps = []
    for (We, be, Wr, br, Wm, bm) in full_params:
        s = modulus * jnp.exp(1j * phi)
        s_steps.append(s)
        sr = jnp.broadcast_to(jnp.real(s)[:, None, :], (B, M, Ls))
        si = jnp.broadcast_to(jnp.imag(s)[:, None, :], (B, M, Ls))
        yb = jnp.broadcast_to(y_t[None], (B, M, Ly))
        x = jnp.concatenate([sr, si, w_r, w_i, yb], axis=-1)   # (B, M, D)
        eta = x @ We + be[0]                                   # (B, M, Ls)
        rho = x @ Wr + br[0]                                   # (B, M, 1)
        mu = x @ Wm + bm[0]                                    # (B, M, 1)
        phi = phi - jnp.sum(mu * rho * eta, axis=1)
    s_steps.append(modulus * jnp.exp(1j * phi))
    return {'s_stack_batch': jnp.stack(s_steps, axis=1).astype(jnp.complex64),
            'mu_stack_batch': jnp.zeros((B, N_step, M), jnp.float32)}


# ----------------------------------- main ------------------------------------ #

if __name__ == "__main__":
    # constants: M, Nt, N, Lw, Ly, N_step, modulus
    B, M, Nt, N, Lw, Ly, N_step = 2, 4, 2, 4, 6, 5, 3
    Ls = Nt * N
    modulus = 1.0

    key = jax.random.PRNGKey(0)
    k_phi, k_wr, k_wi, k_y, k_params = jax.random.split(key, 5)

    phi0_batch = jax.random.uniform(k_phi, (B, Ls), jnp.float32, 0.0, 2.0 * jnp.pi)
    w_M_batch = (jax.random.normal(k_wr, (B, Lw, M), jnp.float32)
                 + 1j * jax.random.normal(k_wi, (B, Lw, M), jnp.float32)).astype(jnp.complex64)
    y_M = jax.random.normal(k_y, (Ly, M), jnp.float32)

    step_keys = jax.random.split(k_params, N_step)
    full_params = [make_step_params(k, Ls, Lw, Ly) for k in step_keys]

    out = srel_vary_mu_forward(phi0_batch, w_M_batch, y_M, full_params, modulus=modulus)
    jax.block_until_ready(out)

    ref = reference_forward(phi0_batch, w_M_batch, y_M, full_params, modulus=modulus)

    assert out['s_stack_batch'].shape == (B, N_step + 1, Ls)
    assert out['s_stack_batch'].dtype == jnp.complex64
    assert out['mu_stack_batch'].shape == (B, N_step, M)
    assert jnp.allclose(out['s_stack_batch'], ref['s_stack_batch'], atol=1e-4, rtol=1e-4)

    print("KERNEL_OK")
</pallas_src>

<mosaic_0001>
module attributes {stable_mosaic.version = 11 : i64} {
  func.func @_srel_fused_kernel(%arg0: i32, %arg1: memref<2x8xf32, #tpu.memory_space<vmem>>, %arg2: memref<1x16x10xf32, #tpu.memory_space<vmem>>, %arg3: memref<1x2x4x10xf32, #tpu.memory_space<vmem>>, %arg4: memref<1x2x8xf32, #tpu.memory_space<vmem>>, %arg5: memref<2x8xf32, #tpu.memory_space<vmem>>) attributes {dimension_semantics = [#tpu.dimension_semantics<arbitrary>], iteration_bounds = array<i64: 3>, scalar_prefetch = 0 : i64, scratch_operands = 1 : i64, tpu.core_type = #tpu.core_type<tc>, window_params = [{pipeline_mode = #tpu.pipeline_mode<synchronous>, transform_indices = @transform_0, window_bounds = array<i64: 2, 8>}, {transform_indices = @transform_1, window_bounds = array<i64: 1, 16, 10>}, {transform_indices = @transform_2, window_bounds = array<i64: 1, 2, 4, 10>}, {transform_indices = @transform_3, window_bounds = array<i64: 1, 2, 8>}]} {
    %c0_i32 = arith.constant 0 : i32
    %0 = arith.cmpi eq, %arg0, %c0_i32 : i32
    %1 = arith.extui %0 : i1 to i32
    %c0_i32_0 = arith.constant 0 : i32
    %2 = arith.cmpi ne, %1, %c0_i32_0 : i32
    scf.if %2 {
      %c0_18 = arith.constant 0 : index
      %c0_19 = arith.constant 0 : index
      %34 = vector.load %arg1[%c0_18, %c0_19] : memref<2x8xf32, #tpu.memory_space<vmem>>, vector<2x8xf32>
      %c0_20 = arith.constant 0 : index
      %c0_21 = arith.constant 0 : index
      %35 = vector.load %arg5[%c0_20, %c0_21] : memref<2x8xf32, #tpu.memory_space<vmem>>, vector<2x8xf32>
      tpu.vector_store %arg5[%c0_20, %c0_21], %34 {strides = array<i32>} : memref<2x8xf32, #tpu.memory_space<vmem>>, vector<2x8xf32>,
    } else {
    }
    %c0 = arith.constant 0 : index
    %c0_1 = arith.constant 0 : index
    %3 = vector.load %arg5[%c0, %c0_1] : memref<2x8xf32, #tpu.memory_space<vmem>>, vector<2x8xf32>
    %4 = math.cos %3 : vector<2x8xf32>
    %cst = arith.constant 1.000000e+00 : f32
    %5 = vector.broadcast %cst : f32 to vector<2x8xf32>
    %6 = arith.mulf %5, %4 : vector<2x8xf32>
    %7 = math.sin %3 : vector<2x8xf32>
    %cst_2 = arith.constant 1.000000e+00 : f32
    %8 = vector.broadcast %cst_2 : f32 to vector<2x8xf32>
    %9 = arith.mulf %8, %7 : vector<2x8xf32>
    %c0_3 = arith.constant 0 : index
    %c0_4 = arith.constant 0 : index
    %c0_5 = arith.constant 0 : index
    %10 = vector.load %arg2[%c0_3, %c0_4, %c0_5] : memref<1x16x10xf32, #tpu.memory_space<vmem>>, vector<1x16x10xf32>
    %11 = vector.shape_cast %10 : vector<1x16x10xf32> to vector<16x10xf32>
    %12 = vector.extract_strided_slice %11 {offsets = [0, 0], sizes = [8, 10], strides = [1, 1]} : vector<16x10xf32> to vector<8x10xf32>
    %cst_6 = arith.constant dense<0.000000e+00> : vector<2x10xf32>
    %13 = tpu.matmul %6, %12, %cst_6 {dimension_numbers = #tpu.dot_dimension_numbers<[1], [0], [0], [1], [0, 0, 1, 1], [], []>} : vector<2x8xf32>, vector<8x10xf32>, vector<2x10xf32> -> vector<2x10xf32>
    %14 = vector.extract_strided_slice %11 {offsets = [8, 0], sizes = [8, 10], strides = [1, 1]} : vector<16x10xf32> to vector<8x10xf32>
    %cst_7 = arith.constant dense<0.000000e+00> : vector<2x10xf32>
    %15 = tpu.matmul %9, %14, %cst_7 {dimension_numbers = #tpu.dot_dimension_numbers<[1], [0], [0], [1], [0, 0, 1, 1], [], []>} : vector<2x8xf32>, vector<8x10xf32>, vector<2x10xf32> -> vector<2x10xf32>
    %16 = arith.addf %13, %15 : vector<2x10xf32>
    %c0_8 = arith.constant 0 : index
    %c0_9 = arith.constant 0 : index
    %c0_10 = arith.constant 0 : index
    %c0_11 = arith.constant 0 : index
    %17 = vector.load %arg3[%c0_8, %c0_9, %c0_10, %c0_11] : memref<1x2x4x10xf32, #tpu.memory_space<vmem>>, vector<1x2x4x10xf32>
    %18 = vector.shape_cast %17 : vector<1x2x4x10xf32> to vector<2x4x10xf32>
    %19 = vector.shape_cast %16 : vector<2x10xf32> to vector<2x1x10xf32>
    %20 = vector.broadcast %19 : vector<2x1x10xf32> to vector<2x4x10xf32>
    %21 = arith.addf %18, %20 : vector<2x4x10xf32>
    %22 = vector.extract_strided_slice %21 {offsets = [0, 0, 0], sizes = [2, 4, 8], strides = [1, 1, 1]} : vector<2x4x10xf32> to vector<2x4x8xf32>
    %23 = vector.extract_strided_slice %21 {offsets = [0, 0, 8], sizes = [2, 4, 1], strides = [1, 1, 1]} : vector<2x4x10xf32> to vector<2x4x1xf32>
    %24 = vector.extract_strided_slice %21 {offsets = [0, 0, 9], sizes = [2, 4, 1], strides = [1, 1, 1]} : vector<2x4x10xf32> to vector<2x4x1xf32>
    %25 = arith.mulf %24, %23 : vector<2x4x1xf32>
    %26 = vector.broadcast %25 : vector<2x4x1xf32> to vector<2x4x8xf32>
    %27 = arith.mulf %26, %22 : vector<2x4x8xf32>
    %cst_12 = arith.constant dense<0.000000e+00> : vector<2x8xf32>
    %28 = vector.multi_reduction <add>, %27, %cst_12 [1] : vector<2x4x8xf32> to vector<2x8xf32>
    %29 = arith.subf %3, %28 : vector<2x8xf32>
    %c0_13 = arith.constant 0 : index
    %c0_14 = arith.constant 0 : index
    %30 = vector.load %arg5[%c0_13, %c0_14] : memref<2x8xf32, #tpu.memory_space<vmem>>, vector<2x8xf32>
    tpu.vector_store %arg5[%c0_13, %c0_14], %29 {strides = array<i32>} : memref<2x8xf32, #tpu.memory_space<vmem>>, vector<2x8xf32>,
    %c0_15 = arith.constant 0 : index
    %c0_16 = arith.constant 0 : index
    %c0_17 = arith.constant 0 : index
    %31 = vector.load %arg4[%c0_15, %c0_16, %c0_17] : memref<1x2x8xf32, #tpu.memory_space<vmem>>, vector<1x2x8xf32>
    %32 = vector.shape_cast %31 : vector<1x2x8xf32> to vector<2x8xf32>
    %33 = vector.shape_cast %29 : vector<2x8xf32> to vector<1x2x8xf32>
    tpu.vector_store %arg4[%c0_15, %c0_16, %c0_17], %33 {strides = array<i32>} : memref<1x2x8xf32, #tpu.memory_space<vmem>>, vector<1x2x8xf32>,
    return
  }
  func.func @transform_0(%arg0: i32) -> (i32, i32) {
    %c0_i32 = arith.constant 0 : i32
    %c0_i32_0 = arith.constant 0 : i32
    %c0_i32_1 = arith.constant 0 : i32
    return %c0_i32, %c0_i32_0 : i32, i32
  }
  func.func @transform_1(%arg0: i32) -> (i32, i32, i32) {
    %c0_i32 = arith.constant 0 : i32
    %c0_i32_0 = arith.constant 0 : i32
    %c0_i32_1 = arith.constant 0 : i32
    return %arg0, %c0_i32, %c0_i32_0 : i32, i32, i32
  }
  func.func @transform_2(%arg0: i32) -> (i32, i32, i32, i32) {
    %c0_i32 = arith.constant 0 : i32
    %c0_i32_0 = arith.constant 0 : i32
    %c0_i32_1 = arith.constant 0 : i32
    %c0_i32_2 = arith.constant 0 : i32
    return %arg0, %c0_i32, %c0_i32_0, %c0_i32_1 : i32, i32, i32, i32
  }
  func.func @transform_3(%arg0: i32) -> (i32, i32, i32) {
    %c0_i32 = arith.constant 0 : i32
    %c0_i32_0 = arith.constant 0 : i32
    %c0_i32_1 = arith.constant 0 : i32
    return %arg0, %c0_i32, %c0_i32_0 : i32, i32, i32
  }
}

</mosaic_0001>

<llo_original>
// kernel: tpu_custom_call.1
$region0: #{tpu_custom_call.1}
  #allocation0 [shape = 'u32[]', space=smem, size = 0x4, offset = 0x4, fixed_abs, tag = 'smem constant byte address 0x4 - core index']
  #allocation1 [shape = 'u32[144,128]{1,0:T(1,128)}', space=vmem, size = 0x12000, scoped, tag = 'internal scratch']
  #allocation2 [shape = 'f32[2,8]{1,0:T(2,128)}', space=vmem, size = 0x400, scoped, tag = 'scratch operand']
  %s0 = inlined_call_operand.vmem [shape: f32[2,8], index: 0, kind: input, shape index: {}]
  %s1 = inlined_call_operand.vmem [shape: f32[3,16,10], index: 1, kind: input, shape index: {}]
  %s2 = inlined_call_operand.vmem [shape: f32[3,2,4,10], index: 2, kind: input, shape index: {}]
  %s3 = inlined_call_operand.hbm [shape: f32[3,2,8], index: 3, kind: output, shape index: {}]
  %s4 = sld [smem:[#allocation0]]
  $region49: #{tpu_custom_call.1} parent=0
    _
  %s6 = ssub.s32 1, %s4
  %s7 = scalar_select 0, %s6, %s4
  $region1: #{tpu_custom_call.1} parent=0
    #allocation3 [shape = 'u8[2048]{0}', space=vmem, size = 0x800, scoped, tag = 'output window, operand 0']
    #allocation4 [shape = 's32[2]{0}', space=sflag, size = 0x8, scoped, tag = 'scoped memory for tpu_custom_call.1']
    %8 = vsyncpa [#allocation4], 0
    %s9 = scalar_lea.sflag [#allocation4], 1
    %10 = vsyncpa %s9, 0
    loop: start=0, step=1, limit=5
    $region2: #{tpu_custom_call.1} parent=1 // loop_pre_header
      _
    $region3: #{tpu_custom_call.1} parent=1 // loop_header
      %s12 = sphi 0, %s16
      %p13 = scmp.ge.s32.totalorder %s12, 5
      %s20 = sphi 0, %s20
      %s22 = sphi 0, %s20
      %s23 = sphi 0, %s22
      %s37 = sphi 0, %s23
      %s43 = sphi 0, %s45
      %s46 = sphi 0, %s43
      %s47 = sphi 0, %s46
      %s63 = sphi 0, %s47
      %s69 = sphi 0, %s71
      %s72 = sphi 0, %s69
      %s73 = sphi 0, %s72
      %s89 = sphi 0, %s73
      %s95 = sphi 0, %s97
      %s98 = sphi 0, %s95
      %s99 = sphi 0, %s98
      %s115 = sphi 0, %s99
    $region4: #{tpu_custom_call.1} parent=1 // loop_header_branch
      %15 = sbr.rel (%p13) target = $region8
    $region5: #{tpu_custom_call.1} parent=1 // loop_body
      %s17 = ssub.s32 %s12, 1
      %s18 = ssub.s32 %s12, 2
      %s19 = sadd.s32 %s12, 1
      %s21 = sadd.s32 %s20, 1
      %p24 = scmp.eq.s32.totalorder %s12, 2
      %p25 = scmp.ne.s32.totalorder %s20, %s22
      %p26 = scmp.eq.s32.totalorder %s12, 0
      %p27 = por %p25, %p26
      %p28 = scmp.ne.s32.totalorder %s20, %s22
      %p29 = scmp.eq.s32.totalorder %s17, 2
      %p30 = por %p28, %p29
      %p31 = scmp.ne.s32.totalorder %s22, %s23
      %p32 = scmp.eq.s32.totalorder %s17, 0
      %p33 = por %p31, %p32
      %p34 = scmp.ne.s32.totalorder %s22, %s23
      %p35 = scmp.eq.s32.totalorder %s18, 2
      %p36 = por %p34, %p35
      %p38 = scmp.ne.s32.totalorder %s23, %s37
      %p39 = scmp.eq.s32.totalorder %s18, 0
      %p40 = por %p38, %p39
      %s41 = ssub.s32 %s12, %s19
      %p42 = scmp.eq.s32.totalorder %s41, 0
      %s44 = sadd.s32 %s43, 1
      %s45 = scalar_select %p42, %s43, %s44
      %p48 = pneg %p42
      %p49 = scmp.eq.s32.totalorder %s12, 2
      %p50 = por %p48, %p49
      %p51 = scmp.ne.s32.totalorder %s43, %s46
      %p52 = scmp.eq.s32.totalorder %s12, 0
      %p53 = por %p51, %p52
      %p54 = scmp.ne.s32.totalorder %s43, %s46
      %p55 = scmp.eq.s32.totalorder %s17, 2
      %p56 = por %p54, %p55
      %p57 = scmp.ne.s32.totalorder %s46, %s47
      %p58 = scmp.eq.s32.totalorder %s17, 0
      %p59 = por %p57, %p58
      %p60 = scmp.ne.s32.totalorder %s46, %s47
      %p61 = scmp.eq.s32.totalorder %s18, 2
      %p62 = por %p60, %p61
      %p64 = scmp.ne.s32.totalorder %s47, %s63
      %p65 = scmp.eq.s32.totalorder %s18, 0
      %p66 = por %p64, %p65
      %s67 = ssub.s32 %s12, %s19
      %p68 = scmp.eq.s32.totalorder %s67, 0
      %s70 = sadd.s32 %s69, 1
      %s71 = scalar_select %p68, %s69, %s70
      %p74 = pneg %p68
      %p75 = scmp.eq.s32.totalorder %s12, 2
      %p76 = por %p74, %p75
      %p77 = scmp.ne.s32.totalorder %s69, %s72
      %p78 = scmp.eq.s32.totalorder %s12, 0
      %p79 = por %p77, %p78
      %p80 = scmp.ne.s32.totalorder %s69, %s72
      %p81 = scmp.eq.s32.totalorder %s17, 2
      %p82 = por %p80, %p81
      %p83 = scmp.ne.s32.totalorder %s72, %s73
      %p84 = scmp.eq.s32.totalorder %s17, 0
      %p85 = por %p83, %p84
      %p86 = scmp.ne.s32.totalorder %s72, %s73
      %p87 = scmp.eq.s32.totalorder %s18, 2
      %p88 = por %p86, %p87
      %p90 = scmp.ne.s32.totalorder %s73, %s89
      %p91 = scmp.eq.s32.totalorder %s18, 0
      %p92 = por %p90, %p91
      %s93 = ssub.s32 %s12, %s19
      %p94 = scmp.eq.s32.totalorder %s93, 0
      %s96 = sadd.s32 %s95, 1
      %s97 = scalar_select %p94, %s95, %s96
      %p100 = pneg %p94
      %p101 = scmp.eq.s32.totalorder %s12, 2
      %p102 = por %p100, %p101
      %p103 = scmp.ne.s32.totalorder %s95, %s98
      %p104 = scmp.eq.s32.totalorder %s12, 0
      %p105 = por %p103, %p104
      %p106 = scmp.ne.s32.totalorder %s95, %s98
      %p107 = scmp.eq.s32.totalorder %s17, 2
      %p108 = por %p106, %p107
      %p109 = scmp.ne.s32.totalorder %s98, %s99
      %p110 = scmp.eq.s32.totalorder %s17, 0
      %p111 = por %p109, %p110
      %p112 = scmp.ne.s32.totalorder %s98, %s99
      %p113 = scmp.eq.s32.totalorder %s18, 2
      %p114 = por %p112, %p113
      %p116 = scmp.ne.s32.totalorder %s99, %s115
      %p117 = scmp.eq.s32.totalorder %s18, 0
      %p118 = por %p116, %p117
      %p119 = scmp.le.s32.totalorder 1, %s12
      %p120 = scmp.lt.s32.totalorder %s12, 4
      %p121 = pnand %p119, %p120
      %p122 = pneg %p121
      // Predicated region
      $region9: #{tpu_custom_call.1} parent=5 // pred_check
        _
      $region10: #{tpu_custom_call.1} parent=5 // pred_check_branch
        %124 = sbr.rel (%p121) target = $region12
      $region11: #{tpu_custom_call.1} parent=5 // pred_region
        %s125 = ssub.s32 %s12, 1
        // Predicated region
        $region13: #{tpu_custom_call.1} parent=11 // pred_check
          %p126 = pneg %p33
        $region14: #{tpu_custom_call.1} parent=11 // pred_check_branch
          %128 = sbr.rel (%p126) target = $region16
        $region15: #{tpu_custom_call.1} parent=11 // pred_region
          _
        $region16: #{tpu_custom_call.1} parent=11 // pred_fallthru
          _
      $region12: #{tpu_custom_call.1} parent=5 // pred_fallthru
        _
      %p129 = scmp.lt.s32.totalorder %s12, 3
      // Predicated region
      $region17: #{tpu_custom_call.1} parent=5 // pred_check
        %p130 = pneg %p129
      $region18: #{tpu_custom_call.1} parent=5 // pred_check_branch
        %132 = sbr.rel (%p130) target = $region20
      $region19: #{tpu_custom_call.1} parent=5 // pred_region
        // Predicated region
        $region21: #{tpu_custom_call.1} parent=19 // pred_check
          %p133 = pneg %p53
        $region22: #{tpu_custom_call.1} parent=19 // pred_check_branch
          %135 = sbr.rel (%p133) target = $region24
        $region23: #{tpu_custom_call.1} parent=19 // pred_region
          %p136 = scmp.lt.s32.totalorder %s12, 2
          %s137 = scalar_select %p136, %s12, 2
          %s138 = smul.addr %s137, 2
          %s139 = smul.addr %s138, 8
          %s140 = scalar_lea.vmem %s1, %s139
        $region24: #{tpu_custom_call.1} parent=19 // pred_fallthru
          _
        // Predicated region
        $region25: #{tpu_custom_call.1} parent=19 // pred_check
          %p141 = pneg %p79
        $region26: #{tpu_custom_call.1} parent=19 // pred_check_branch
          %143 = sbr.rel (%p141) target = $region28
        $region27: #{tpu_custom_call.1} parent=19 // pred_region
          %p144 = scmp.lt.s32.totalorder %s12, 2
          %s145 = scalar_select %p144, %s12, 2
          %s146 = smul.addr %s145, 2
          %s147 = smul.addr %s146, 4
          %s148 = scalar_lea.vmem %s2, %s147
        $region28: #{tpu_custom_call.1} parent=19 // pred_fallthru
          _
      $region20: #{tpu_custom_call.1} parent=5 // pred_fallthru
        _
      %p149 = scmp.le.s32.totalorder 1, %s12
      %p150 = scmp.lt.s32.totalorder %s12, 4
      %p151 = pnand %p149, %p150
      %p152 = pneg %p151
      // Predicated region
      $region29: #{tpu_custom_call.1} parent=5 // pred_check
        _
      $region30: #{tpu_custom_call.1} parent=5 // pred_check_branch
        %154 = sbr.rel (%p151) target = $region32
      $region31: #{tpu_custom_call.1} parent=5 // pred_region
        %s155 = ssub.s32 %s12, 1
        %p156 = pneg %p33
        %p157 = pneg %p30
        %p158 = scmp.lt.s32.totalorder %s17, 2
        %s159 = scalar_select %p158, %s17, 2
        %s160 = smul.addr %s159, 2
        %s161 = smul.addr %s160, 8
        %s162 = scalar_lea.vmem %s1, %s161
        %p163 = pneg %p59
        %p164 = pneg %p56
        %p165 = scmp.lt.s32.totalorder %s17, 2
        %s166 = scalar_select %p165, %s17, 2
        %s167 = smul.addr %s166, 2
        %s168 = smul.addr %s167, 4
        %s169 = scalar_lea.vmem %s2, %s168
        %p170 = pneg %p85
        %p171 = pneg %p82
        %p172 = pneg %p111
        %p173 = pneg %p108
        %s174 = sand.u32 %s98, 1
        %s175 = scalar_lea.sflag [#allocation4], %s174
        %s176 = sand.u32 %s98, 1
        %s177 = smul.addr %s176, 2
        %s178 = scalar_lea.vmem [#allocation3], %s177
        %p179 = scmp.lt.s32.totalorder %s17, 2
        %s180 = scalar_select %p179, %s17, 2
        %s181 = smul.addr %s180, 2
        %s182 = smul.addr %s181, 8
        %s183 = scalar_lea.vmem %s1, %s182
        %p184 = scmp.lt.s32.totalorder %s17, 2
        %s185 = scalar_select %p184, %s17, 2
        %s186 = smul.addr %s185, 2
        %s187 = smul.addr %s186, 4
        %s188 = scalar_lea.vmem %s2, %s187
        %p189 = scmp.eq.s32.totalorder %s17, 0
        // Predicated region
        $region33: #{tpu_custom_call.1} parent=31 // pred_check
          %p190 = pneg %p189
        $region34: #{tpu_custom_call.1} parent=31 // pred_check_branch
          %192 = sbr.rel (%p190) target = $region36
        $region35: #{tpu_custom_call.1} parent=31 // pred_region
          %v193 = vld [vmem:[%s0] sm:$0x3]
          %vm194 = vcmask 58368
          %195 = vst.msk [vmem:[#allocation2] sm:$0x3] %vm194, %v193
        $region36: #{tpu_custom_call.1} parent=31 // pred_fallthru
          _
        %v196 = vld [vmem:[#allocation2] sm:$0x3]
        %v197 = vand.u32 2147483647, %v196
        %vm198 = vcmp.le.f32.partialorder %v197, 0.7853982
        %vm199 = vcmp.lt.s32.totalorder %v196, 0
        %v200 = vand.u32 %v196, 2139095040
        %v201 = vshrl.u32 %v200, 23
        %v202 = vsub.s32 %v201, 127
        %v203 = vand.u32 2147483647, %v196
        %v204 = vand.u32 %v203, 8388607
        %v205 = vor.u32 %v204, 8388608
        %v206 = vsub.s32 0, %v205
        %v207 = vadd.s32 %v202, 1
        %vm208 = vcmp.gt.s32.totalorder %v207, 0
        %v209 = vsel %vm208, %v207, 0
        %v210 = vshrl.u32 %v209, 5
        %v211 = vand.u32 %v209, 31
        %v212 = vsub.s32 32, %v211
        %v213 = vshrl.u32 683565275, %v212
        %v214 = vshll.u32 683565275, %v211
        %v215 = vshrl.u32 2475754826, %v212
        %v216 = vor.u32 %v214, %v215
        %v217 = vshll.u32 2475754826, %v211
        %v218 = vshrl.u32 2131351028, %v212
        %v219 = vor.u32 %v217, %v218
        %v220 = vshll.u32 2131351028, %v211
        %v221 = vshrl.u32 2102212464, %v212
        %v222 = vor.u32 %v220, %v221
        %v223 = vshll.u32 2102212464, %v211
        %v224 = vshrl.u32 920167782, %v212
        %v225 = vor.u32 %v223, %v224
        %v226 = vshll.u32 920167782, %v211
        %v227 = vshrl.u32 1326507024, %v212
        %v228 = vor.u32 %v226, %v227
        %vm229 = vcmp.lt.s32.totalorder %v210, 1
        %vm230 = vcmp.lt.s32.totalorder %v210, 2
        %vm231 = vcmp.lt.s32.totalorder %v210, 3
        %vm232 = vcmp.lt.s32.totalorder %v210, 4
        %v233 = vsel %vm229, %v213, %v216
        %v234 = vsel %vm232, %v222, 2102212464
        %v235 = vsel %vm231, %v219, %v234
        %v236 = vsel %vm230, %v233, %v235
        %v237 = vsel %vm229, %v216, %v219
        %v238 = vsel %vm232, %v225, 920167782
        %v239 = vsel %vm231, %v222, %v238
        %v240 = vsel %vm230, %v237, %v239
        %v241 = vsel %vm229, %v219, %v222
        %v242 = vsel %vm232, %v228, 1326507024
        %v243 = vsel %vm231, %v225, %v242
        %v244 = vsel %vm230, %v241, %v243
        %v245 = vshll.u32 %v205, 8
        %v246 = vmul.u32.u64.compose %v245, %v244
        %v247 = vextract.low.u32 %v246
        %v248 = vextract.high.u32 %v246
        %v249 = vmul.u32.u64.compose %v245, %v240
        %v250 = vextract.low.u32 %v249
        %v251 = vextract.high.u32 %v249
        %v252 = vmul.u32 %v245, %v236
        %v253 = vadd.s32 %v248, %v250
        %vm254 = vc.u32 %v248, %v250
        %v255 = vadd.s32 %v251, 1
        %v256 = vsel %vm254, %v255, %v251
        %v257 = vadd.s32 %v252, %v256
        %v258 = vadd.s32 %v257, 536870912
        %v259 = vshrl.u32 %v258, 30
        %v260 = vshll.u32 %v259, 30
        %v261 = vsub.s32 %v257, %v260
        %vm262 = vcmp.lt.s32.totalorder %v261, 0
        %v263 = vsub.s32 0, %v261
        %v264 = vsel %vm262, %v263, %v261
        %v265 = vclz %v264
        %v266 = vsub.s32 %v265, 2
        %vm267 = vcmp.gt.s32.totalorder 0, %v266
        %v268 = vsel %vm267, 0, %v266
        %v269 = vsub.s32 32, %v268
        %v270 = vshll.u32 %v261, %v268
        %v271 = vshrl.u32 %v253, %v269
        %v272 = vor.u32 %v270, %v271
        %v273 = vsub.s32 4294967266, %v268
        %v274 = vadd.s32 %v273, 127
        %v275 = vshll.u32 %v274, 23
        %v276 = vor.u32 4788187, %v275
        %v277 = vand.u32 2147483647, %v276
        %v279 = vcvt.s32.f32 %v272
        %v280 = vmul.f32 %v279, %v277
        %v281 = vxor.u32 %v280, 2147483648
        %v282 = vsel %vm199, %v281, %v280
        %v283 = vsub.s32 4, %v259
        %v284 = vsel %vm199, %v283, %v259
        %v285 = vsel %vm198, %v196, %v282
        %v286 = vsel %vm198, 0, %v284
        %v287 = vcosq.f32.pop %v285
        %v288 = vsinq.f32.pop %v285
        %vm289 = vweird.f32 %v196
        %v290 = vand.u32 %v286, 3
        %vm291 = vcmp.lt.s32.totalorder %v290, 2
        %vm292 = vcmp.eq.s32.totalorder %v290, 0
        %v293 = vxor.u32 %v288, 2147483648
        %v294 = vsel %vm292, %v287, %v293
        %vm295 = vcmp.eq.s32.totalorder %v290, 2
        %v296 = vxor.u32 %v287, 2147483648
        %v297 = vsel %vm295, %v296, %v288
        %v298 = vsel %vm291, %v294, %v297
        %v299 = vsel %vm289, nan, %v298
        %v300 = vand.u32 2147483647, %v196
        %vm301 = vcmp.le.f32.partialorder %v300, 0.7853982
        %vm302 = vcmp.lt.s32.totalorder %v196, 0
        %v303 = vand.u32 %v196, 2139095040
        %v304 = vshrl.u32 %v303, 23
        %v305 = vsub.s32 %v304, 127
        %v306 = vand.u32 2147483647, %v196
        %v307 = vand.u32 %v306, 8388607
        %v308 = vor.u32 %v307, 8388608
        %v309 = vsub.s32 0, %v308
        %v310 = vadd.s32 %v305, 1
        %vm311 = vcmp.gt.s32.totalorder %v310, 0
        %v312 = vsel %vm311, %v310, 0
        %v313 = vshrl.u32 %v312, 5
        %v314 = vand.u32 %v312, 31
        %v315 = vsub.s32 32, %v314
        %v316 = vshrl.u32 683565275, %v315
        %v317 = vshll.u32 683565275, %v314
        %v318 = vshrl.u32 2475754826, %v315
        %v319 = vor.u32 %v317, %v318
        %v320 = vshll.u32 2475754826, %v314
        %v321 = vshrl.u32 2131351028, %v315
        %v322 = vor.u32 %v320, %v321
        %v323 = vshll.u32 2131351028, %v314
        %v324 = vshrl.u32 2102212464, %v315
        %v325 = vor.u32 %v323, %v324
        %v326 = vshll.u32 2102212464, %v314
        %v327 = vshrl.u32 920167782, %v315
        %v328 = vor.u32 %v326, %v327
        %v329 = vshll.u32 920167782, %v314
        %v330 = vshrl.u32 1326507024, %v315
        %v331 = vor.u32 %v329, %v330
        %vm332 = vcmp.lt.s32.totalorder %v313, 1
        %vm333 = vcmp.lt.s32.totalorder %v313, 2
        %vm334 = vcmp.lt.s32.totalorder %v313, 3
        %vm335 = vcmp.lt.s32.totalorder %v313, 4
        %v336 = vsel %vm332, %v316, %v319
        %v337 = vsel %vm335, %v325, 2102212464
        %v338 = vsel %vm334, %v322, %v337
        %v339 = vsel %vm333, %v336, %v338
        %v340 = vsel %vm332, %v319, %v322
        %v341 = vsel %vm335, %v328, 920167782
        %v342 = vsel %vm334, %v325, %v341
        %v343 = vsel %vm333, %v340, %v342
        %v344 = vsel %vm332, %v322, %v325
        %v345 = vsel %vm335, %v331, 1326507024
        %v346 = vsel %vm334, %v328, %v345
        %v347 = vsel %vm333, %v344, %v346
        %v348 = vshll.u32 %v308, 8
        %v349 = vmul.u32.u64.compose %v348, %v347
        %v350 = vextract.low.u32 %v349
        %v351 = vextract.high.u32 %v349
        %v352 = vmul.u32.u64.compose %v348, %v343
        %v353 = vextract.low.u32 %v352
        %v354 = vextract.high.u32 %v352
        %v355 = vmul.u32 %v348, %v339
        %v356 = vadd.s32 %v351, %v353
        %vm357 = vc.u32 %v351, %v353
        %v358 = vadd.s32 %v354, 1
        %v359 = vsel %vm357, %v358, %v354
        %v360 = vadd.s32 %v355, %v359
        %v361 = vadd.s32 %v360, 536870912
        %v362 = vshrl.u32 %v361, 30
        %v363 = vshll.u32 %v362, 30
        %v364 = vsub.s32 %v360, %v363
        %vm365 = vcmp.lt.s32.totalorder %v364, 0
        %v366 = vsub.s32 0, %v364
        %v367 = vsel %vm365, %v366, %v364
        %v368 = vclz %v367
        %v369 = vsub.s32 %v368, 2
        %vm370 = vcmp.gt.s32.totalorder 0, %v369
        %v371 = vsel %vm370, 0, %v369
        %v372 = vsub.s32 32, %v371
        %v373 = vshll.u32 %v364, %v371
        %v374 = vshrl.u32 %v356, %v372
        %v375 = vor.u32 %v373, %v374
        %v376 = vsub.s32 4294967266, %v371
        %v377 = vadd.s32 %v376, 127
        %v378 = vshll.u32 %v377, 23
        %v379 = vor.u32 4788187, %v378
        %v380 = vand.u32 2147483647, %v379
        %v382 = vcvt.s32.f32 %v375
        %v383 = vmul.f32 %v382, %v380
        %v384 = vxor.u32 %v383, 2147483648
        %v385 = vsel %vm302, %v384, %v383
        %v386 = vsub.s32 4, %v362
        %v387 = vsel %vm302, %v386, %v362
        %v388 = vsel %vm301, %v196, %v385
        %v389 = vsel %vm301, 0, %v387
        %v390 = vcosq.f32.pop %v388
        %v391 = vsinq.f32.pop %v388
        %vm392 = vweird.f32 %v196
        %v393 = vadd.s32 %v389, 3
        %v394 = vand.u32 %v393, 3
        %vm395 = vcmp.lt.s32.totalorder %v394, 2
        %vm396 = vcmp.eq.s32.totalorder %v394, 0
        %v397 = vxor.u32 %v391, 2147483648
        %v398 = vsel %vm396, %v390, %v397
        %vm399 = vcmp.eq.s32.totalorder %v394, 2
        %v400 = vxor.u32 %v390, 2147483648
        %v401 = vsel %vm399, %v400, %v391
        %v402 = vsel %vm395, %v398, %v401
        %v403 = vsel %vm392, nan, %v402
        %v404 = vld [vmem:[%s183] sm:$0xff]
        %v405 = vld [vmem:[%s183 + $0x8] sm:$0xff]
        %vm406 = vcmask 64512
        %v408 = vsel %vm406, %v403, 0
        %410 = vmatprep.subr.mxu0 0.0
        %411 = vmatpush1.msra.mxu0 %v405
        %412 = vmatprep.subr.mxu0 0.0
        %413 = vmatpush1.msra.mxu0 0.0
        %414 = vmatprep.subr.mxu0 0.0
        %415 = vmatpush1.msra.mxu0 0.0
        %416 = vmatprep.subr.mxu0 0.0
        %417 = vmatpush1.msra.mxu0 0.0
        %418 = vmatprep.subr.mxu0 0.0
        %419 = vmatpush1.msra.mxu0 0.0
        %420 = vmatprep.subr.mxu0 0.0
        %421 = vmatpush1.msra.mxu0 0.0
        %422 = vmatprep.subr.mxu0 0.0
        %423 = vmatpush1.msra.mxu0 0.0
        %424 = vmatprep.subr.mxu0 0.0
        %425 = vmatpush1.msra.mxu0 0.0
        %426 = vmatprep.subr.mxu0 0.0
        %427 = vmatpush1.msra.mxu0 0.0
        %428 = vmatprep.subr.mxu0 0.0
        %429 = vmatpush1.msra.mxu0 0.0
        %430 = vmatprep.subr.mxu0 0.0
        %431 = vmatpush1.msra.mxu0 0.0
        %432 = vmatprep.subr.mxu0 0.0
        %433 = vmatpush1.msra.mxu0 0.0
        %434 = vmatprep.subr.mxu0 0.0
        %435 = vmatpush1.msra.mxu0 0.0
        %436 = vmatprep.subr.mxu0 0.0
        %437 = vmatpush1.msra.mxu0 0.0
        %438 = vmatprep.subr.mxu0 0.0
        %439 = vmatpush1.msra.mxu0 0.0
        %440 = vmatprep.subr.mxu0 0.0
        %441 = vmatpush1.msra.mxu0 0.0
        %442 = vmatprep.subr.mxu0 0.0
        %443 = vmatpush1.msra.mxu0 0.0
        %444 = vmatprep.subr.mxu0 0.0
        %445 = vmatpush1.msra.mxu0 0.0
        %446 = vmatprep.subr.mxu0 0.0
        %447 = vmatpush1.msra.mxu0 0.0
        %448 = vmatprep.subr.mxu0 0.0
        %449 = vmatpush1.msra.mxu0 0.0
        %450 = vmatprep.subr.mxu0 0.0
        %451 = vmatpush1.msra.mxu0 0.0
        %452 = vmatprep.subr.mxu0 0.0
        %453 = vmatpush1.msra.mxu0 0.0
        %454 = vmatprep.subr.mxu0 0.0
        %455 = vmatpush1.msra.mxu0 0.0
        %456 = vmatprep.subr.mxu0 0.0
        %457 = vmatpush1.msra.mxu0 0.0
        %458 = vmatprep.subr.mxu0 0.0
        %459 = vmatpush1.msra.mxu0 0.0
        %460 = vmatprep.subr.mxu0 0.0
        %461 = vmatpush1.msra.mxu0 0.0
        %462 = vmatprep.subr.mxu0 0.0
        %463 = vmatpush1.msra.mxu0 0.0
        %464 = vmatprep.subr.mxu0 0.0
        %465 = vmatpush1.msra.mxu0 0.0
        %466 = vmatprep.subr.mxu0 0.0
        %467 = vmatpush1.msra.mxu0 0.0
        %468 = vmatprep.subr.mxu0 0.0
        %469 = vmatpush1.msra.mxu0 0.0
        %470 = vmatprep.subr.mxu0 0.0
        %471 = vmatpush1.msra.mxu0 0.0
        %472 = vmatprep.subr.mxu0 0.0
        %473 = vmatpush1.msra.mxu0 0.0
        %474 = vmatprep.mubr.f32.mxu0 0.0
        %475 = vmatmul.mubr.f32.gmra.mrb[0].mxu0 %v408
        %v476 = vpop.f32.mrb[0].mxu0
        %v477 = vadd.f32 0.0, %v476
        %v478 = vpop.f32.mrb[0].mxu0
        %479 = vdwg.mxu0
        %v481 = vsel %vm406, %v299, 0
        %483 = vmatprep.subr.mxu0 0.0
        %484 = vmatpush1.msra.mxu0 %v404
        %485 = vmatprep.subr.mxu0 0.0
        %486 = vmatpush1.msra.mxu0 0.0
        %487 = vmatprep.subr.mxu0 0.0
        %488 = vmatpush1.msra.mxu0 0.0
        %489 = vmatprep.subr.mxu0 0.0
        %490 = vmatpush1.msra.mxu0 0.0
        %491 = vmatprep.subr.mxu0 0.0
        %492 = vmatpush1.msra.mxu0 0.0
        %493 = vmatprep.subr.mxu0 0.0
        %494 = vmatpush1.msra.mxu0 0.0
        %495 = vmatprep.subr.mxu0 0.0
        %496 = vmatpush1.msra.mxu0 0.0
        %497 = vmatprep.subr.mxu0 0.0
        %498 = vmatpush1.msra.mxu0 0.0
        %499 = vmatprep.subr.mxu0 0.0
        %500 = vmatpush1.msra.mxu0 0.0
        %501 = vmatprep.subr.mxu0 0.0
        %502 = vmatpush1.msra.mxu0 0.0
        %503 = vmatprep.subr.mxu0 0.0
        %504 = vmatpush1.msra.mxu0 0.0
        %505 = vmatprep.subr.mxu0 0.0
        %506 = vmatpush1.msra.mxu0 0.0
        %507 = vmatprep.subr.mxu0 0.0
        %508 = vmatpush1.msra.mxu0 0.0
        %509 = vmatprep.subr.mxu0 0.0
        %510 = vmatpush1.msra.mxu0 0.0
        %511 = vmatprep.subr.mxu0 0.0
        %512 = vmatpush1.msra.mxu0 0.0
        %513 = vmatprep.subr.mxu0 0.0
        %514 = vmatpush1.msra.mxu0 0.0
        %515 = vmatprep.subr.mxu0 0.0
        %516 = vmatpush1.msra.mxu0 0.0
        %517 = vmatprep.subr.mxu0 0.0
        %518 = vmatpush1.msra.mxu0 0.0
        %519 = vmatprep.subr.mxu0 0.0
        %520 = vmatpush1.msra.mxu0 0.0
        %521 = vmatprep.subr.mxu0 0.0
        %522 = vmatpush1.msra.mxu0 0.0
        %523 = vmatprep.subr.mxu0 0.0
        %524 = vmatpush1.msra.mxu0 0.0
        %525 = vmatprep.subr.mxu0 0.0
        %526 = vmatpush1.msra.mxu0 0.0
        %527 = vmatprep.subr.mxu0 0.0
        %528 = vmatpush1.msra.mxu0 0.0
        %529 = vmatprep.subr.mxu0 0.0
        %530 = vmatpush1.msra.mxu0 0.0
        %531 = vmatprep.subr.mxu0 0.0
        %532 = vmatpush1.msra.mxu0 0.0
        %533 = vmatprep.subr.mxu0 0.0
        %534 = vmatpush1.msra.mxu0 0.0
        %535 = vmatprep.subr.mxu0 0.0
        %536 = vmatpush1.msra.mxu0 0.0
        %537 = vmatprep.subr.mxu0 0.0
        %538 = vmatpush1.msra.mxu0 0.0
        %539 = vmatprep.subr.mxu0 0.0
        %540 = vmatpush1.msra.mxu0 0.0
        %541 = vmatprep.subr.mxu0 0.0
        %542 = vmatpush1.msra.mxu0 0.0
        %543 = vmatprep.subr.mxu0 0.0
        %544 = vmatpush1.msra.mxu0 0.0
        %545 = vmatprep.subr.mxu0 0.0
        %546 = vmatpush1.msra.mxu0 0.0
        %547 = vmatprep.mubr.f32.mxu0 0.0
        %548 = vmatmul.mubr.f32.gmra.mrb[0].mxu0 %v481
        %v549 = vpop.f32.mrb[0].mxu0
        %v550 = vadd.f32 %v477, %v549
        %v551 = vpop.f32.mrb[0].mxu0
        %552 = vdwg.mxu0
        %v553 = vld [vmem:[%s188] sm:$0xf]
        %v554 = vld [vmem:[%s188 + $0x4] sm:$0xf]
        %v557 = vunpack.c.l.s4 1966171168
        %v558 = vunpack.c.0.s8 %v557
        %v559 = vlaneseq
        %v560 = vshrl.u32 %v559, 7
        %v561 = vsub.s32 %v558, %v560
        %v562 = vrot.slane %v550, %v561
        %v563 = vcombine.high %v562, %v562
        %v565 = vunpack.c.l.s4 1966171168
        %v566 = vunpack.c.0.s8 %v565
        %v567 = vlaneseq
        %v568 = vshrl.u32 %v567, 7
        %v569 = vsub.s32 %v566, %v568
        %v570 = vrot.slane %v562, %v569
        %v572 = vunpack.c.l.s4 1966171168
        %v573 = vunpack.c.0.s8 %v572
        %v574 = vlaneseq
        %v575 = vshrl.u32 %v574, 7
        %v576 = vsub.s32 %v573, %v575
        %v577 = vrot.slane %v563, %v576
        %v578 = vlaneseq
        %v579 = vshrl.u32 %v578, 7
        %v580 = vsub.s32 0, %v579
        %v581 = vrot.slane %v570, %v580
        %v582 = vlaneseq
        %v583 = vshrl.u32 %v582, 7
        %v584 = vsub.s32 0, %v583
        %v585 = vrot.slane %v577, %v584
        %v588 = vadd.f32 %v553, %v581
        %v589 = vadd.f32 %v554, %v585
        %592 = vrot.lane.b32.xlu0 %v588, 1
        %v593 = vpop.permute.xlu0 %592
        %594 = vrot.lane.b32.xlu0 %v589, 1
        %v595 = vpop.permute.xlu0 %594
        %v598 = vmul.f32 %v588, %v593
        %v599 = vmul.f32 %v589, %v595
        %601 = vset.pattern.permute.xlu0 9
        %602 = vperm.xlu0 %601, %v598
        %v603 = vpop.permute.xlu0 %602
        %606 = vset.pattern.permute.xlu0 9
        %607 = vperm.xlu0 %606, %v599
        %v608 = vpop.permute.xlu0 %607
        %v610 = vmul.f32 %v603, %v588
        %v611 = vmul.f32 %v608, %v589
        %vm612 = vcmask 60416
        %v613 = vsel %vm612, %v610, 0.0
        %v614 = vrot.slane %v613, 4
        %v615 = vadd.f32 %v613, %v614
        %v616 = vrot.slane %v615, 2
        %v617 = vadd.f32 %v615, %v616
        %v618 = vrot.slane %v617, 1
        %v619 = vadd.f32 %v617, %v618
        %v620 = vsel %vm612, %v611, 0.0
        %v621 = vrot.slane %v620, 4
        %v622 = vadd.f32 %v620, %v621
        %v623 = vrot.slane %v622, 2
        %v624 = vadd.f32 %v622, %v623
        %v625 = vrot.slane %v624, 1
        %v626 = vadd.f32 %v624, %v625
        %vm629 = vcmask 1041409
        %v630 = vsel %vm629, %v626, %v619
        %v632 = vsub.f32 %v196, %v630
        %vm633 = vcmask 58368
        %634 = vst.msk [vmem:[#allocation2] sm:$0x3] %vm633, %v632
        %635 = vst.msk [vmem:[%s178] sm:$0x3] %vm633, %v632
        %s636 = sand.u32 %s98, 1
        %s637 = scalar_lea.sflag [#allocation4], %s636
        %s638 = sand.u32 %s98, 1
        %s639 = smul.addr %s638, 2
        %s640 = scalar_lea.vmem [#allocation3], %s639
        // Predicated region
        $region37: #{tpu_custom_call.1} parent=31 // pred_check
          %p641 = pneg %p108
        $region38: #{tpu_custom_call.1} parent=31 // pred_check_branch
          %643 = sbr.rel (%p641) target = $region40
        $region39: #{tpu_custom_call.1} parent=31 // pred_region
          %s645 = ssub.s32 32, 32
          %646 = vsyncadd %s637, %s645
          %s647 = smul.addr %s17, 32
          %s648 = scalar_lea.hbm %s3, %s647
          %s650 = sshll.u32 %s640, 4
          %s651 = int_to_ptr.vmem [resolvable:$true] %s650
          %653 = dma.vmem_to_hbm [thread:$0]  %s651, 32, %s648, %s637
        $region40: #{tpu_custom_call.1} parent=31 // pred_fallthru
          _
      $region32: #{tpu_custom_call.1} parent=5 // pred_fallthru
        _
      %p654 = scmp.le.s32.totalorder 2, %s12
      // Predicated region
      $region41: #{tpu_custom_call.1} parent=5 // pred_check
        %p655 = pneg %p654
      $region42: #{tpu_custom_call.1} parent=5 // pred_check_branch
        %657 = sbr.rel (%p655) target = $region44
      $region43: #{tpu_custom_call.1} parent=5 // pred_region
        %s658 = ssub.s32 %s12, 2
        // Predicated region
        $region45: #{tpu_custom_call.1} parent=43 // pred_check
          %p659 = pneg %p114
        $region46: #{tpu_custom_call.1} parent=43 // pred_check_branch
          %661 = sbr.rel (%p659) target = $region48
        $region47: #{tpu_custom_call.1} parent=43 // pred_region
          %s662 = sand.u32 %s99, 1
          %s663 = scalar_lea.sflag [#allocation4], %s662
          %s664 = sand.u32 %s99, 1
          %s665 = smul.addr %s664, 2
          %s666 = scalar_lea.vmem [#allocation3], %s665
          %667 = dma.done %s663, 32
        $region48: #{tpu_custom_call.1} parent=43 // pred_fallthru
          _
      $region44: #{tpu_custom_call.1} parent=5 // pred_fallthru
        _
    $region6: #{tpu_custom_call.1} parent=1 // loop_footer
      %s16 = sadd.s32 1, %s12
    $region7: #{tpu_custom_call.1} parent=1 // loop_footer_branch
      %11 = sbr.rel target = $region3
    $region8: #{tpu_custom_call.1} parent=1 // loop_exit
      _
    %668 = vsyncpa [#allocation4], 1
    %s669 = scalar_lea.sflag [#allocation4], 1
    %670 = vsyncpa %s669, 1

</llo_original>
